<compile_context>
chip_gen: v7x
topology: tpu7x:2x2x1
jax: 0.10.0
libtpu: 0.0.40
codegen_flags: <defaults>
</compile_context>

<pallas_src>
import jax
import jax.numpy as jnp
from jax.experimental import pallas as pl
from jax.experimental.pallas import tpu as pltpu

LANE = 128
SUBLANE = 8
MAX_TILE_ROWS = 512  # rows per grid step; 3 slabs x 2 buffers stays << 16 MiB


# ----------------------------- fused kernel -------------------------------- #

def _make_bn_kernel(node_list, node_index, offsets):
    """Build the fused topological-sweep kernel (all structure is static)."""

    def kernel(scalars_ref, data_ref, noise_ref, out_ref):
        # scalars_ref : SMEM f32[num_scalars]   (packed per-node params)
        # data_ref    : VMEM f32[M, tile_rows, 128]
        # noise_ref   : VMEM f32[M, tile_rows, 128]
        # out_ref     : VMEM f32[M, tile_rows, 128]
        for i, (_, parents) in enumerate(node_list):
            off = offsets[i]
            noise = noise_ref[i]                      # (tile_rows, 128)
            if not parents:
                mean = scalars_ref[off]               # scalar mean
                std = scalars_ref[off + 1]            # scalar std
                out_ref[i] = mean + std * noise
            else:
                std = scalars_ref[off + len(parents) + 1]
                # bias + noise term (scalar broadcasts), then one FMA per parent
                acc = scalars_ref[off] + std * noise
                for k, parent in enumerate(parents):
                    acc = acc + scalars_ref[off + 1 + k] * data_ref[node_index[parent]]
                out_ref[i] = acc

    return kernel


# ----------------------------- module port --------------------------------- #

class BayesianNetworkPallas:
    """JAX/Pallas port of bn.py::BayesianNetwork (forward only)."""

    def __init__(self, node_info):
        self.node_info = dict(node_info)
        self.node_list = list(self.node_info.items())
        self.node_index = {n: i for i, n in enumerate(self.node_info)}

        self.params = {}
        offsets = []
        off = 0
        for node, parents in self.node_list:
            offsets.append(off)
            if not parents:
                # shapes match nn.Parameter(torch.zeros(1)) / torch.ones(1);
                # deterministic, slightly non-trivial values to exercise compute
                self.params[f"{node}_mean"] = jnp.array([0.5], jnp.float32)
                self.params[f"{node}_var"] = jnp.array([1.0], jnp.float32)
                off += 2                               # [mean, std]
            else:
                p = len(parents)
                self.params[f"{node}_beta"] = 0.1 * (
                    jnp.arange(p + 1, dtype=jnp.float32) + 1.0
                )
                self.params[f"{node}_res_var"] = jnp.array([1.0], jnp.float32)
                off += p + 2                           # [beta_0..beta_p, std]
        self.offsets = tuple(offsets)
        self.num_scalars = off
        self._kernel = _make_bn_kernel(self.node_list, self.node_index, self.offsets)

    def _pack_scalars(self):
        pieces = []
        for node, parents in self.node_list:
            if not parents:
                pieces.append(self.params[f"{node}_mean"].astype(jnp.float32))
                pieces.append(jnp.sqrt(self.params[f"{node}_var"]).astype(jnp.float32))
            else:
                pieces.append(self.params[f"{node}_beta"].astype(jnp.float32))
                pieces.append(jnp.sqrt(self.params[f"{node}_res_var"]).astype(jnp.float32))
        return jnp.concatenate(pieces)

    def forward(self, data, noise):
        """data/noise: dict node -> (N,) float arrays. Returns dict node -> (N,) f32."""
        nodes = [n for n, _ in self.node_list]
        m = len(nodes)
        n = data[nodes[0]].shape[0]

        # lane-dense (rows, 128) slabs, padded once; rows multiple of 8 (sublane)
        rows = pl.cdiv(n, LANE)
        rows = pl.cdiv(rows, SUBLANE) * SUBLANE
        # keep 3 slabs (data/noise/out) x 2 pipeline buffers well under scoped VMEM
        budget_rows = max(SUBLANE, (2048 // max(m, 1)) // SUBLANE * SUBLANE)
        tile_rows = min(MAX_TILE_ROWS, rows, budget_rows)
        grid_rows = pl.cdiv(rows, tile_rows)
        rows = grid_rows * tile_rows
        n_pad = rows * LANE

        def slab(vecs):
            x = jnp.stack([v.astype(jnp.float32) for v in vecs], axis=0)   # (m, n)
            x = jnp.pad(x, ((0, 0), (0, n_pad - n)))
            return x.reshape(m, rows, LANE)

        data_slab = slab([data[node] for node in nodes])
        noise_slab = slab([noise[node] for node in nodes])
        scalars = self._pack_scalars()

        out = pl.pallas_call(
            self._kernel,
            out_shape=jax.ShapeDtypeStruct((m, rows, LANE), jnp.float32),
            grid=(grid_rows,),
            in_specs=[
                pl.BlockSpec(memory_space=pltpu.MemorySpace.SMEM),          # params
                pl.BlockSpec((m, tile_rows, LANE), lambda r: (0, r, 0)),    # data
                pl.BlockSpec((m, tile_rows, LANE), lambda r: (0, r, 0)),    # noise
            ],
            out_specs=pl.BlockSpec((m, tile_rows, LANE), lambda r: (0, r, 0)),
            compiler_params=pltpu.CompilerParams(
                dimension_semantics=("parallel",),   # shard rows across TCs (v7x)
            ),
        )(scalars, data_slab, noise_slab)

        flat = out.reshape(m, n_pad)[:, :n]
        return {node: flat[i] for i, node in enumerate(nodes)}


# --------------------------- reference (pure JAX) --------------------------- #

def reference_forward(net, data, noise):
    out = {}
    for node, parents in net.node_info.items():
        n = data[node].shape[0]
        if not parents:
            mean = net.params[f"{node}_mean"][0]
            std = jnp.sqrt(net.params[f"{node}_var"][0])
            out[node] = mean + std * noise[node]
        else:
            X = jnp.stack([data[p].astype(jnp.float32) for p in parents], axis=1)
            X = jnp.concatenate([jnp.ones((n, 1), jnp.float32), X], axis=1)
            mean = X @ net.params[f"{node}_beta"]
            std = jnp.sqrt(net.params[f"{node}_res_var"][0])
            out[node] = mean + std * noise[node]
    return out


if __name__ == "__main__":
    # Small synthetic Bayesian network: two roots, two regression children.
    node_info = {"A": [], "B": [], "C": ["A", "B"], "D": ["A", "B", "C"]}
    N = 300  # not a multiple of 128 -> exercises lane padding

    key = jax.random.PRNGKey(0)
    data_keys = jax.random.split(key, len(node_info))
    noise_keys = jax.random.split(jax.random.fold_in(key, 1), len(node_info))

    data = {}
    noise = {}
    for i, node in enumerate(node_info):
        data[node] = jax.random.normal(data_keys[i], (N,), jnp.float32)
        noise[node] = jax.random.normal(noise_keys[i], (N,), jnp.float32)

    net = BayesianNetworkPallas(node_info)
    samples = net.forward(data, noise)
    for node in samples:
        samples[node] = jax.block_until_ready(samples[node])

    ref = reference_forward(net, data, noise)
    for node in node_info:
        assert samples[node].shape == (N,), node
        assert samples[node].dtype == jnp.float32, node
        assert jnp.allclose(samples[node], ref[node], atol=1e-5, rtol=1e-5), node

    print("KERNEL_OK")
</pallas_src>

<mosaic_0001>
module attributes {stable_mosaic.version = 11 : i64} {
  func.func @kernel(%arg0: i32, %arg1: memref<13xf32, #tpu.memory_space<smem>>, %arg2: memref<4x8x128xf32, #tpu.memory_space<vmem>>, %arg3: memref<4x8x128xf32, #tpu.memory_space<vmem>>, %arg4: memref<4x8x128xf32, #tpu.memory_space<vmem>>) attributes {dimension_semantics = [#tpu.dimension_semantics<parallel>], iteration_bounds = array<i64: 1>, scalar_prefetch = 0 : i64, scratch_operands = 0 : i64, tpu.core_type = #tpu.core_type<tc>, window_params = [{transform_indices = @transform_0, window_bounds = array<i64: 13>}, {transform_indices = @transform_1, window_bounds = array<i64: 4, 8, 128>}, {transform_indices = @transform_2, window_bounds = array<i64: 4, 8, 128>}, {transform_indices = @transform_3, window_bounds = array<i64: 4, 8, 128>}]} {
    %c0 = arith.constant 0 : index
    %c0_0 = arith.constant 0 : index
    %c0_1 = arith.constant 0 : index
    %0 = vector.load %arg3[%c0, %c0_0, %c0_1] : memref<4x8x128xf32, #tpu.memory_space<vmem>>, vector<1x8x128xf32>
    %1 = vector.shape_cast %0 : vector<1x8x128xf32> to vector<8x128xf32>
    %c0_2 = arith.constant 0 : index
    %2 = memref.load %arg1[%c0_2] : memref<13xf32, #tpu.memory_space<smem>>
    %c1 = arith.constant 1 : index
    %3 = memref.load %arg1[%c1] : memref<13xf32, #tpu.memory_space<smem>>
    %4 = vector.broadcast %3 : f32 to vector<8x128xf32>
    %5 = arith.mulf %4, %1 : vector<8x128xf32>
    %6 = vector.broadcast %2 : f32 to vector<8x128xf32>
    %7 = arith.addf %6, %5 : vector<8x128xf32>
    %c0_3 = arith.constant 0 : index
    %c0_4 = arith.constant 0 : index
    %c0_5 = arith.constant 0 : index
    %8 = vector.load %arg4[%c0_3, %c0_4, %c0_5] : memref<4x8x128xf32, #tpu.memory_space<vmem>>, vector<1x8x128xf32>
    %9 = vector.shape_cast %8 : vector<1x8x128xf32> to vector<8x128xf32>
    %10 = vector.shape_cast %7 : vector<8x128xf32> to vector<1x8x128xf32>
    tpu.vector_store %arg4[%c0_3, %c0_4, %c0_5], %10 {strides = array<i32>} : memref<4x8x128xf32, #tpu.memory_space<vmem>>, vector<1x8x128xf32>,
    %c1_6 = arith.constant 1 : index
    %c0_7 = arith.constant 0 : index
    %c0_8 = arith.constant 0 : index
    %11 = vector.load %arg3[%c1_6, %c0_7, %c0_8] : memref<4x8x128xf32, #tpu.memory_space<vmem>>, vector<1x8x128xf32>
    %12 = vector.shape_cast %11 : vector<1x8x128xf32> to vector<8x128xf32>
    %c2 = arith.constant 2 : index
    %13 = memref.load %arg1[%c2] : memref<13xf32, #tpu.memory_space<smem>>
    %c3 = arith.constant 3 : index
    %14 = memref.load %arg1[%c3] : memref<13xf32, #tpu.memory_space<smem>>
    %15 = vector.broadcast %14 : f32 to vector<8x128xf32>
    %16 = arith.mulf %15, %12 : vector<8x128xf32>
    %17 = vector.broadcast %13 : f32 to vector<8x128xf32>
    %18 = arith.addf %17, %16 : vector<8x128xf32>
    %c1_9 = arith.constant 1 : index
    %c0_10 = arith.constant 0 : index
    %c0_11 = arith.constant 0 : index
    %19 = vector.load %arg4[%c1_9, %c0_10, %c0_11] : memref<4x8x128xf32, #tpu.memory_space<vmem>>, vector<1x8x128xf32>
    %20 = vector.shape_cast %19 : vector<1x8x128xf32> to vector<8x128xf32>
    %21 = vector.shape_cast %18 : vector<8x128xf32> to vector<1x8x128xf32>
    tpu.vector_store %arg4[%c1_9, %c0_10, %c0_11], %21 {strides = array<i32>} : memref<4x8x128xf32, #tpu.memory_space<vmem>>, vector<1x8x128xf32>,
    %c2_12 = arith.constant 2 : index
    %c0_13 = arith.constant 0 : index
    %c0_14 = arith.constant 0 : index
    %22 = vector.load %arg3[%c2_12, %c0_13, %c0_14] : memref<4x8x128xf32, #tpu.memory_space<vmem>>, vector<1x8x128xf32>
    %23 = vector.shape_cast %22 : vector<1x8x128xf32> to vector<8x128xf32>
    %c7 = arith.constant 7 : index
    %24 = memref.load %arg1[%c7] : memref<13xf32, #tpu.memory_space<smem>>
    %c4 = arith.constant 4 : index
    %25 = memref.load %arg1[%c4] : memref<13xf32, #tpu.memory_space<smem>>
    %26 = vector.broadcast %24 : f32 to vector<8x128xf32>
    %27 = arith.mulf %26, %23 : vector<8x128xf32>
    %28 = vector.broadcast %25 : f32 to vector<8x128xf32>
    %29 = arith.addf %28, %27 : vector<8x128xf32>
    %c5 = arith.constant 5 : index
    %30 = memref.load %arg1[%c5] : memref<13xf32, #tpu.memory_space<smem>>
    %c0_15 = arith.constant 0 : index
    %c0_16 = arith.constant 0 : index
    %c0_17 = arith.constant 0 : index
    %31 = vector.load %arg2[%c0_15, %c0_16, %c0_17] : memref<4x8x128xf32, #tpu.memory_space<vmem>>, vector<1x8x128xf32>
    %32 = vector.shape_cast %31 : vector<1x8x128xf32> to vector<8x128xf32>
    %33 = vector.broadcast %30 : f32 to vector<8x128xf32>
    %34 = arith.mulf %33, %32 : vector<8x128xf32>
    %35 = arith.addf %29, %34 : vector<8x128xf32>
    %c6 = arith.constant 6 : index
    %36 = memref.load %arg1[%c6] : memref<13xf32, #tpu.memory_space<smem>>
    %c1_18 = arith.constant 1 : index
    %c0_19 = arith.constant 0 : index
    %c0_20 = arith.constant 0 : index
    %37 = vector.load %arg2[%c1_18, %c0_19, %c0_20] : memref<4x8x128xf32, #tpu.memory_space<vmem>>, vector<1x8x128xf32>
    %38 = vector.shape_cast %37 : vector<1x8x128xf32> to vector<8x128xf32>
    %39 = vector.broadcast %36 : f32 to vector<8x128xf32>
    %40 = arith.mulf %39, %38 : vector<8x128xf32>
    %41 = arith.addf %35, %40 : vector<8x128xf32>
    %c2_21 = arith.constant 2 : index
    %c0_22 = arith.constant 0 : index
    %c0_23 = arith.constant 0 : index
    %42 = vector.load %arg4[%c2_21, %c0_22, %c0_23] : memref<4x8x128xf32, #tpu.memory_space<vmem>>, vector<1x8x128xf32>
    %43 = vector.shape_cast %42 : vector<1x8x128xf32> to vector<8x128xf32>
    %44 = vector.shape_cast %41 : vector<8x128xf32> to vector<1x8x128xf32>
    tpu.vector_store %arg4[%c2_21, %c0_22, %c0_23], %44 {strides = array<i32>} : memref<4x8x128xf32, #tpu.memory_space<vmem>>, vector<1x8x128xf32>,
    %c3_24 = arith.constant 3 : index
    %c0_25 = arith.constant 0 : index
    %c0_26 = arith.constant 0 : index
    %45 = vector.load %arg3[%c3_24, %c0_25, %c0_26] : memref<4x8x128xf32, #tpu.memory_space<vmem>>, vector<1x8x128xf32>
    %46 = vector.shape_cast %45 : vector<1x8x128xf32> to vector<8x128xf32>
    %c12 = arith.constant 12 : index
    %47 = memref.load %arg1[%c12] : memref<13xf32, #tpu.memory_space<smem>>
    %c8 = arith.constant 8 : index
    %48 = memref.load %arg1[%c8] : memref<13xf32, #tpu.memory_space<smem>>
    %49 = vector.broadcast %47 : f32 to vector<8x128xf32>
    %50 = arith.mulf %49, %46 : vector<8x128xf32>
    %51 = vector.broadcast %48 : f32 to vector<8x128xf32>
    %52 = arith.addf %51, %50 : vector<8x128xf32>
    %c9 = arith.constant 9 : index
    %53 = memref.load %arg1[%c9] : memref<13xf32, #tpu.memory_space<smem>>
    %c0_27 = arith.constant 0 : index
    %c0_28 = arith.constant 0 : index
    %c0_29 = arith.constant 0 : index
    %54 = vector.load %arg2[%c0_27, %c0_28, %c0_29] : memref<4x8x128xf32, #tpu.memory_space<vmem>>, vector<1x8x128xf32>
    %55 = vector.shape_cast %54 : vector<1x8x128xf32> to vector<8x128xf32>
    %56 = vector.broadcast %53 : f32 to vector<8x128xf32>
    %57 = arith.mulf %56, %55 : vector<8x128xf32>
    %58 = arith.addf %52, %57 : vector<8x128xf32>
    %c10 = arith.constant 10 : index
    %59 = memref.load %arg1[%c10] : memref<13xf32, #tpu.memory_space<smem>>
    %c1_30 = arith.constant 1 : index
    %c0_31 = arith.constant 0 : index
    %c0_32 = arith.constant 0 : index
    %60 = vector.load %arg2[%c1_30, %c0_31, %c0_32] : memref<4x8x128xf32, #tpu.memory_space<vmem>>, vector<1x8x128xf32>
    %61 = vector.shape_cast %60 : vector<1x8x128xf32> to vector<8x128xf32>
    %62 = vector.broadcast %59 : f32 to vector<8x128xf32>
    %63 = arith.mulf %62, %61 : vector<8x128xf32>
    %64 = arith.addf %58, %63 : vector<8x128xf32>
    %c11 = arith.constant 11 : index
    %65 = memref.load %arg1[%c11] : memref<13xf32, #tpu.memory_space<smem>>
    %c2_33 = arith.constant 2 : index
    %c0_34 = arith.constant 0 : index
    %c0_35 = arith.constant 0 : index
    %66 = vector.load %arg2[%c2_33, %c0_34, %c0_35] : memref<4x8x128xf32, #tpu.memory_space<vmem>>, vector<1x8x128xf32>
    %67 = vector.shape_cast %66 : vector<1x8x128xf32> to vector<8x128xf32>
    %68 = vector.broadcast %65 : f32 to vector<8x128xf32>
    %69 = arith.mulf %68, %67 : vector<8x128xf32>
    %70 = arith.addf %64, %69 : vector<8x128xf32>
    %c3_36 = arith.constant 3 : index
    %c0_37 = arith.constant 0 : index
    %c0_38 = arith.constant 0 : index
    %71 = vector.load %arg4[%c3_36, %c0_37, %c0_38] : memref<4x8x128xf32, #tpu.memory_space<vmem>>, vector<1x8x128xf32>
    %72 = vector.shape_cast %71 : vector<1x8x128xf32> to vector<8x128xf32>
    %73 = vector.shape_cast %70 : vector<8x128xf32> to vector<1x8x128xf32>
    tpu.vector_store %arg4[%c3_36, %c0_37, %c0_38], %73 {strides = array<i32>} : memref<4x8x128xf32, #tpu.memory_space<vmem>>, vector<1x8x128xf32>,
    return
  }
  func.func @transform_0(%arg0: i32) -> i32 {
    %c0_i32 = arith.constant 0 : i32
    %c0_i32_0 = arith.constant 0 : i32
    return %c0_i32 : i32
  }
  func.func @transform_1(%arg0: i32) -> (i32, i32, i32) {
    %c0_i32 = arith.constant 0 : i32
    %c0_i32_0 = arith.constant 0 : i32
    %c0_i32_1 = arith.constant 0 : i32
    return %c0_i32, %arg0, %c0_i32_0 : i32, i32, i32
  }
  func.func @transform_2(%arg0: i32) -> (i32, i32, i32) {
    %c0_i32 = arith.constant 0 : i32
    %c0_i32_0 = arith.constant 0 : i32
    %c0_i32_1 = arith.constant 0 : i32
    return %c0_i32, %arg0, %c0_i32_0 : i32, i32, i32
  }
  func.func @transform_3(%arg0: i32) -> (i32, i32, i32) {
    %c0_i32 = arith.constant 0 : i32
    %c0_i32_0 = arith.constant 0 : i32
    %c0_i32_1 = arith.constant 0 : i32
    return %c0_i32, %arg0, %c0_i32_0 : i32, i32, i32
  }
}

</mosaic_0001>

<llo_original>
// kernel: tpu_custom_call.1
$region0: #{tpu_custom_call.1}
  #allocation0 [shape = 'u32[]', space=smem, size = 0x4, offset = 0x4, fixed_abs, tag = 'smem constant byte address 0x4 - core index']
  #allocation1 [shape = 'u32[144,128]{1,0:T(1,128)}', space=vmem, size = 0x12000, scoped, tag = 'internal scratch']
  %s0 = inlined_call_operand.hbm [shape: f32[13], index: 0, kind: input, shape index: {}]
  %s1 = inlined_call_operand.hbm [shape: f32[4,8,128], index: 1, kind: input, shape index: {}]
  %s2 = inlined_call_operand.hbm [shape: f32[4,8,128], index: 2, kind: input, shape index: {}]
  %s3 = inlined_call_operand.hbm [shape: f32[4,8,128], index: 3, kind: output, shape index: {}]
  %s4 = sld [smem:[#allocation0]]
  $region34: #{tpu_custom_call.1} parent=0
    _
  %s6 = ssub.s32 1, %s4
  %s7 = scalar_select 0, %s6, %s4
  $region1: #{tpu_custom_call.1} parent=0
    #allocation2 [shape = 'u8[512]{0}', space=smem, size = 0x200, scoped, tag = 'input window, operand 0, single buffered']
    #allocation3 [shape = 's32[1]{0}', space=sflag, size = 0x4, scoped, tag = 'scoped memory for tpu_custom_call.1']
    #allocation4 [shape = 's32[1]{0}', space=sflag, size = 0x4, scoped, tag = 'scoped memory for tpu_custom_call.1']
    #allocation5 [shape = 's32[1]{0}', space=sflag, size = 0x4, scoped, tag = 'scoped memory for tpu_custom_call.1']
    #allocation6 [shape = 'u8[16384]{0}', space=vmem, size = 0x4000, scoped, tag = 'input window, operand 1, single buffered']
    #allocation7 [shape = 'u8[16384]{0}', space=vmem, size = 0x4000, scoped, tag = 'input window, operand 2, single buffered']
    #allocation8 [shape = 's32[1]{0}', space=sflag, size = 0x4, scoped, tag = 'scoped memory for tpu_custom_call.1']
    #allocation9 [shape = 'u8[16384]{0}', space=vmem, size = 0x4000, scoped, tag = 'output window, operand 0, single buffered']
    %8 = vsyncpa [#allocation5], 0
    %9 = vsyncpa [#allocation3], 0
    %10 = vsyncpa [#allocation8], 0
    %11 = vsyncpa [#allocation4], 0
    // Predicated region
    $region2: #{tpu_custom_call.1} parent=1 // pred_check
      _
    $region3: #{tpu_custom_call.1} parent=1 // pred_check_branch
      %13 = sbr.rel (0) target = $region5
    $region4: #{tpu_custom_call.1} parent=1 // pred_region
      %s15 = ssub.s32 16, 16
      %16 = vsyncadd [#allocation5], %s15
      %19 = dma.hbm_to_smem %s0, 16, [#allocation2], [#allocation5]
    $region5: #{tpu_custom_call.1} parent=1 // pred_fallthru
      _
    // Predicated region
    $region6: #{tpu_custom_call.1} parent=1 // pred_check
      _
    $region7: #{tpu_custom_call.1} parent=1 // pred_check_branch
      %21 = sbr.rel (0) target = $region9
    $region8: #{tpu_custom_call.1} parent=1 // pred_region
      %s23 = ssub.s32 512, 512
      %24 = vsyncadd [#allocation3], %s23
      %s25 = sshll.u32 [#allocation6], 4
      %s26 = int_to_ptr.vmem [resolvable:$true] %s25
      %31 = dma.hbm_to_vmem [thread:$0]  %s1, 512, %s26, [#allocation3], 128, 128, 8
    $region9: #{tpu_custom_call.1} parent=1 // pred_fallthru
      _
    // Predicated region
    $region10: #{tpu_custom_call.1} parent=1 // pred_check
      _
    $region11: #{tpu_custom_call.1} parent=1 // pred_check_branch
      %33 = sbr.rel (0) target = $region13
    $region12: #{tpu_custom_call.1} parent=1 // pred_region
      %s35 = ssub.s32 512, 512
      %36 = vsyncadd [#allocation8], %s35
      %s37 = sshll.u32 [#allocation7], 4
      %s38 = int_to_ptr.vmem [resolvable:$true] %s37
      %43 = dma.hbm_to_vmem [thread:$0]  %s2, 512, %s38, [#allocation8], 128, 128, 8
    $region13: #{tpu_custom_call.1} parent=1 // pred_fallthru
      _
    // Predicated region
    $region14: #{tpu_custom_call.1} parent=1 // pred_check
      _
    $region15: #{tpu_custom_call.1} parent=1 // pred_check_branch
      %45 = sbr.rel (0) target = $region17
    $region16: #{tpu_custom_call.1} parent=1 // pred_region
      %46 = dma.done [#allocation5], 16
    $region17: #{tpu_custom_call.1} parent=1 // pred_fallthru
      _
    // Predicated region
    $region18: #{tpu_custom_call.1} parent=1 // pred_check
      _
    $region19: #{tpu_custom_call.1} parent=1 // pred_check_branch
      %48 = sbr.rel (0) target = $region21
    $region20: #{tpu_custom_call.1} parent=1 // pred_region
      %49 = dma.done [#allocation3], 512
    $region21: #{tpu_custom_call.1} parent=1 // pred_fallthru
      _
    // Predicated region
    $region22: #{tpu_custom_call.1} parent=1 // pred_check
      _
    $region23: #{tpu_custom_call.1} parent=1 // pred_check_branch
      %51 = sbr.rel (0) target = $region25
    $region24: #{tpu_custom_call.1} parent=1 // pred_region
      %52 = dma.done [#allocation8], 512
    $region25: #{tpu_custom_call.1} parent=1 // pred_fallthru
      _
    %53 = sfence
    %v54 = vld [vmem:[#allocation7] sm:$0xff]
    %s55 = sld [smem:[#allocation2]]
    %s56 = sld [smem:[#allocation2 + $0x1]]
    %v57 = vstv %s56
    %v58 = vmul.f32 %v57, %v54
    %v59 = vstv %s55
    %v60 = vadd.f32 %v59, %v58
    %61 = vst [vmem:[#allocation9] sm:$0xff] %v60
    %s62 = scalar_lea.vmem [#allocation7], 8
    %v63 = vld [vmem:[%s62] sm:$0xff]
    %s64 = sld [smem:[#allocation2 + $0x2]]
    %s65 = sld [smem:[#allocation2 + $0x3]]
    %v66 = vstv %s65
    %v67 = vmul.f32 %v66, %v63
    %v68 = vstv %s64
    %v69 = vadd.f32 %v68, %v67
    %s70 = scalar_lea.vmem [#allocation9], 8
    %71 = vst [vmem:[%s70] sm:$0xff] %v69
    %s72 = scalar_lea.vmem [#allocation7], 16
    %v73 = vld [vmem:[%s72] sm:$0xff]
    %s74 = sld [smem:[#allocation2 + $0x7]]
    %s75 = sld [smem:[#allocation2 + $0x4]]
    %v76 = vstv %s74
    %v77 = vmul.f32 %v76, %v73
    %v78 = vstv %s75
    %v79 = vadd.f32 %v78, %v77
    %s80 = sld [smem:[#allocation2 + $0x5]]
    %v81 = vld [vmem:[#allocation6] sm:$0xff]
    %v82 = vstv %s80
    %v83 = vmul.f32 %v82, %v81
    %v84 = vadd.f32 %v79, %v83
    %s85 = sld [smem:[#allocation2 + $0x6]]
    %s86 = scalar_lea.vmem [#allocation6], 8
    %v87 = vld [vmem:[%s86] sm:$0xff]
    %v88 = vstv %s85
    %v89 = vmul.f32 %v88, %v87
    %v90 = vadd.f32 %v84, %v89
    %s91 = scalar_lea.vmem [#allocation9], 16
    %92 = vst [vmem:[%s91] sm:$0xff] %v90
    %s93 = scalar_lea.vmem [#allocation7], 24
    %v94 = vld [vmem:[%s93] sm:$0xff]
    %s95 = sld [smem:[#allocation2 + $0xc]]
    %s96 = sld [smem:[#allocation2 + $0x8]]
    %v97 = vstv %s95
    %v98 = vmul.f32 %v97, %v94
    %v99 = vstv %s96
    %v100 = vadd.f32 %v99, %v98
    %s101 = sld [smem:[#allocation2 + $0x9]]
    %v102 = vld [vmem:[#allocation6] sm:$0xff]
    %v103 = vstv %s101
    %v104 = vmul.f32 %v103, %v102
    %v105 = vadd.f32 %v100, %v104
    %s106 = sld [smem:[#allocation2 + $0xa]]
    %v107 = vld [vmem:[%s86] sm:$0xff]
    %v108 = vstv %s106
    %v109 = vmul.f32 %v108, %v107
    %v110 = vadd.f32 %v105, %v109
    %s111 = sld [smem:[#allocation2 + $0xb]]
    %s112 = scalar_lea.vmem [#allocation6], 16
    %v113 = vld [vmem:[%s112] sm:$0xff]
    %v114 = vstv %s111
    %v115 = vmul.f32 %v114, %v113
    %v116 = vadd.f32 %v110, %v115
    %s117 = scalar_lea.vmem [#allocation9], 24
    %118 = vst [vmem:[%s117] sm:$0xff] %v116
    // Predicated region
    $region26: #{tpu_custom_call.1} parent=1 // pred_check
      _
    $region27: #{tpu_custom_call.1} parent=1 // pred_check_branch
      %120 = sbr.rel (0) target = $region29
    $region28: #{tpu_custom_call.1} parent=1 // pred_region
      %s122 = ssub.s32 512, 512
      %123 = vsyncadd [#allocation4], %s122
      %s124 = sshll.u32 [#allocation9], 4
      %s125 = int_to_ptr.vmem [resolvable:$true] %s124
      %130 = dma.vmem_to_hbm [thread:$0]  %s125, 512, %s3, [#allocation4], 128, 128, 8
    $region29: #{tpu_custom_call.1} parent=1 // pred_fallthru
      _
    // Predicated region
    $region30: #{tpu_custom_call.1} parent=1 // pred_check
      _
    $region31: #{tpu_custom_call.1} parent=1 // pred_check_branch
      %132 = sbr.rel (0) target = $region33
    $region32: #{tpu_custom_call.1} parent=1 // pred_region
      %133 = dma.done [#allocation4], 512
    $region33: #{tpu_custom_call.1} parent=1 // pred_fallthru
      _
    %134 = vsyncpa [#allocation3], 1
    %135 = vsyncpa [#allocation8], 1
    %136 = vsyncpa [#allocation4], 1
    %137 = vsyncpa [#allocation5], 1

</llo_original>
